<compile_context>
chip_gen: v6e
topology: v6e:2x2x1
jax: 0.10.0
libtpu: 0.0.40
codegen_flags: <defaults>
</compile_context>

<pallas_src>
import functools

import jax
import jax.numpy as jnp
from jax.experimental import pallas as pl
from jax.experimental.pallas import tpu as pltpu

EPS = 1e-5
MOMENTUM = 0.9
_MiB = 1024 * 1024


# ---------------------------------------------------------------------------
# Tile / VMEM planning (generation-aware)
# ---------------------------------------------------------------------------
def _tpu_vmem_capacity_bytes():
    try:
        return int(getattr(pltpu.get_tpu_info(), "vmem_capacity_bytes", 64 * _MiB))
    except Exception:
        return 64 * _MiB  # conservative fallback: v7x physical VMEM


def _vmem_plan():
    phys = _tpu_vmem_capacity_bytes()
    # Scoped-VMEM request: ~96 MiB on v5e/v6e (128 MiB physical), ~48 MiB on v7x (64 MiB).
    limit = int(min(phys * 3 // 4, 100 * _MiB))
    # Per-pass tile byte budget; leave headroom for double-buffering + compiler scratch.
    budget = max(2 * _MiB, limit // 3)
    return limit, budget


def _pick_tile(total, base, cap):
    """Largest multiple of `base` that divides `total` and is <= cap (>= base);
    falls back to `total` itself when `total` is not a multiple of `base`."""
    if total % base != 0:
        return total
    t = max(base, (min(cap, total) // base) * base)
    while total % t != 0:
        t -= base
    return t


def _moments_h_tile(C, Hp, budget_bytes):
    # f32 bytes per lane column: double-buffered x (2C) + mask (2) + scratch (3C + 1)
    per_h = 4 * (5 * C + 3)
    return _pick_tile(Hp, 128, max(128, min(budget_bytes // per_h, 4096)))


def _apply_tiles(R, Hp, budget_bytes):
    r_t = _pick_tile(R, 8, 512)
    max_elems = max(8 * 128, budget_bytes // 16)  # ~16 B/elem: dbl-buffered in + out, f32
    h_t = _pick_tile(Hp, 128, max(128, min(max_elems // max(r_t, 1), 2048)))
    return r_t, h_t


# ---------------------------------------------------------------------------
# Pass 1 (training): per-channel moment partials, one sample per grid row.
# Emits per-sample  Σx, Σx·m², Σx²·m²  (shape (N,3,C))  and  Σm, Σm²  (shape (N,2,1)).
# ---------------------------------------------------------------------------
def _moments_kernel(x_ref, m_ref, mom_ref, msum_ref, acc_ref, macc_ref):
    h = pl.program_id(1)

    @pl.when(h == 0)
    def _():
        acc_ref[...] = jnp.zeros_like(acc_ref)
        macc_ref[...] = jnp.zeros_like(macc_ref)

    x = x_ref[0].astype(jnp.float32)        # (C, h_t)
    m = m_ref[0].astype(jnp.float32)        # (1, h_t)
    m2 = m * m                              # (1, h_t)
    xm2 = x * m2                            # (C, h_t), sublane broadcast

    # Lane-wide partial sums: pure VPU adds, no per-step cross-lane reduce.
    acc_ref[0] += x
    acc_ref[1] += xm2
    acc_ref[2] += x * xm2
    macc_ref[0] += m
    macc_ref[1] += m2

    @pl.when(h == pl.num_programs(1) - 1)
    def _():
        # Single cross-lane (XLU) reduce per sample, then one tiny lane-sparse store.
        mom_ref[...] = jnp.sum(acc_ref[...], axis=-1)[None]     # (1, 3, C)
        msum_ref[...] = jnp.sum(macc_ref[...], axis=-1)[None]   # (1, 2, 1)


def _moments(x, mask3, h_t, vmem_limit):
    N, C, Hp = x.shape
    grid = (N, Hp // h_t)
    return pl.pallas_call(
        _moments_kernel,
        out_shape=(jax.ShapeDtypeStruct((N, 3, C), jnp.float32),
                   jax.ShapeDtypeStruct((N, 2, 1), jnp.float32)),
        grid_spec=pltpu.PrefetchScalarGridSpec(
            num_scalar_prefetch=0,
            grid=grid,
            in_specs=[
                pl.BlockSpec((1, C, h_t), lambda n, h: (n, 0, h)),
                pl.BlockSpec((1, 1, h_t), lambda n, h: (n, 0, h)),
            ],
            out_specs=(
                pl.BlockSpec((1, 3, C), lambda n, h: (n, 0, 0)),
                pl.BlockSpec((1, 2, 1), lambda n, h: (n, 0, 0)),
            ),
            scratch_shapes=[
                pltpu.VMEM((3, C, h_t), jnp.float32),
                pltpu.VMEM((2, 1, h_t), jnp.float32),
            ],
        ),
        compiler_params=pltpu.CompilerParams(
            dimension_semantics=("parallel", "arbitrary"),
            vmem_limit_bytes=vmem_limit,
        ),
    )(x, mask3)


# ---------------------------------------------------------------------------
# Pass 2: elementwise per-row affine  out = x*scale + bias  on the (N*C, Hpad) view
# ---------------------------------------------------------------------------
def _apply_kernel(x_ref, scale_ref, bias_ref, out_ref):
    x = x_ref[...].astype(jnp.float32)                               # (r_t, h_t)
    out_ref[...] = (x * scale_ref[...] + bias_ref[...]).astype(out_ref.dtype)


def _apply(x2d, scale_rows, bias_rows, r_t, h_t, vmem_limit):
    R, Hp = x2d.shape
    grid = (R // r_t, Hp // h_t)
    return pl.pallas_call(
        _apply_kernel,
        out_shape=jax.ShapeDtypeStruct((R, Hp), x2d.dtype),
        grid_spec=pltpu.PrefetchScalarGridSpec(
            num_scalar_prefetch=0,
            grid=grid,
            in_specs=[
                pl.BlockSpec((r_t, h_t), lambda r, h: (r, h)),
                pl.BlockSpec((r_t, 1), lambda r, h: (r, 0)),
                pl.BlockSpec((r_t, 1), lambda r, h: (r, 0)),
            ],
            out_specs=pl.BlockSpec((r_t, h_t), lambda r, h: (r, h)),
        ),
        compiler_params=pltpu.CompilerParams(
            dimension_semantics=("parallel", "parallel"),
            vmem_limit_bytes=vmem_limit,
        ),
    )(x2d, scale_rows, bias_rows)


# ---------------------------------------------------------------------------
# Wrapper: forward pass of the BatchNorm1d module
# ---------------------------------------------------------------------------
@functools.partial(jax.jit, static_argnames=("training",))
def batch_norm1d_forward(x, mask, gamma, beta, running_mean, running_var,
                         training=True):
    """x: (N, C, H); mask: (N, H); gamma/beta/running_*: (1, C, 1).
    Returns (out, new_running_mean, new_running_var) when training, else out.
    An all-zero mask yields inf/NaN, exactly like the PyTorch reference."""
    N, C, H = x.shape
    vmem_limit, budget = _vmem_plan()

    # Zero-pad H to a multiple of 128 (exact: padded x and mask contribute 0 to every sum);
    # guarantees lane-dense tiles and keeps the moments pass tiled for any H.
    Hp = ((H + 127) // 128) * 128
    if Hp != H:
        x_p = jnp.pad(x, ((0, 0), (0, 0), (0, Hp - H)))
        mask_p = jnp.pad(mask, ((0, 0), (0, Hp - H)))
    else:
        x_p, mask_p = x, mask

    if gamma is None:  # affine=False: the reference returns x un-scaled
        gamma_c = jnp.ones((C,), jnp.float32)
        beta_c = jnp.zeros((C,), jnp.float32)
    else:
        gamma_c = gamma.astype(jnp.float32).reshape(C)
        beta_c = beta.astype(jnp.float32).reshape(C)

    if training:
        h_m = _moments_h_tile(C, Hp, budget)
        mask3 = mask_p.astype(jnp.float32).reshape(N, 1, Hp)
        mom, msums = _moments(x_p, mask3, h_m, vmem_limit)

        tot = jnp.sum(mom, axis=0)                    # (3, C) — tiny host-side sum over N
        sx, sxm2, sx2m2 = tot[0], tot[1], tot[2]
        msum = jnp.sum(msums[:, 0, 0])                # Σ mask   (from the kernel)
        m2sum = jnp.sum(msums[:, 1, 0])               # Σ mask²

        mean_c = sx / msum                            # (C,)
        # Raw-moment expansion of Σ((x-mean)·mask)², accumulated in f32.
        # TODO(synk): use a centered second pass if inputs with |mean| >> std matter.
        var_c = (sx2m2 - 2.0 * mean_c * sxm2 + mean_c * mean_c * m2sum) / msum

        mean = mean_c.reshape(1, C, 1)
        var = var_c.reshape(1, C, 1)
        new_rm = MOMENTUM * running_mean.astype(jnp.float32) + (1.0 - MOMENTUM) * mean
        new_rv = MOMENTUM * running_var.astype(jnp.float32) + (1.0 - MOMENTUM) * var

        # Training output is (x - mean)*gamma + beta (no /sqrt(var+eps), as in the ref).
        scale_c = gamma_c
        bias_c = beta_c - mean_c * gamma_c
    else:
        rm_c = running_mean.astype(jnp.float32).reshape(C)
        rv_c = running_var.astype(jnp.float32).reshape(C)
        inv = jax.lax.rsqrt(rv_c + EPS)
        scale_c = gamma_c * inv
        bias_c = beta_c - rm_c * gamma_c * inv

    # Flattened 2-D apply pass: full sublane occupancy even for tiny C.
    R = N * C
    r_t, h_t = _apply_tiles(R, Hp, budget)
    scale_rows = jnp.tile(scale_c, (N,)).reshape(R, 1)
    bias_rows = jnp.tile(bias_c, (N,)).reshape(R, 1)
    out2d = _apply(x_p.reshape(R, Hp), scale_rows, bias_rows, r_t, h_t, vmem_limit)
    out = out2d.reshape(N, C, Hp)[:, :, :H]

    if training:
        return out, new_rm, new_rv
    return out


# ---------------------------------------------------------------------------
# Pure-JAX references (faithful to the PyTorch code)
# ---------------------------------------------------------------------------
def _ref_train(x, mask, gamma, beta, rm, rv):
    msum = jnp.sum(mask)
    mean = jnp.sum(x, axis=(0, 2), keepdims=True) / msum
    xc = x - mean
    var = jnp.sum((xc * mask[:, None, :]) ** 2, axis=(0, 2), keepdims=True) / msum
    new_rm = MOMENTUM * rm + (1.0 - MOMENTUM) * mean
    new_rv = MOMENTUM * rv + (1.0 - MOMENTUM) * var
    return xc * gamma + beta, new_rm, new_rv


def _ref_eval(x, gamma, beta, rm, rv):
    return ((x - rm) / jnp.sqrt(rv + EPS)) * gamma + beta


if __name__ == "__main__":
    N, C, H = 2, 4, 256
    key = jax.random.PRNGKey(0)
    kx, kg, kb = jax.random.split(key, 3)

    x = jax.random.normal(kx, (N, C, H), dtype=jnp.float32)
    # sequence-length mask: sample 0 keeps all positions, sample 1 keeps 3/4
    lengths = jnp.array([H, (3 * H) // 4], dtype=jnp.int32)
    mask = (jnp.arange(H)[None, :] < lengths[:, None]).astype(jnp.float32)  # (N, H)

    # parameters are (1, C, 1); random values (reset_parameters zeroes them, which would
    # make the output trivially constant)
    gamma = jax.random.normal(kg, (1, C, 1), dtype=jnp.float32)
    beta = jax.random.normal(kb, (1, C, 1), dtype=jnp.float32)
    running_mean = jnp.zeros((1, C, 1), dtype=jnp.float32)
    running_var = jnp.ones((1, C, 1), dtype=jnp.float32)

    # --- training-mode forward ---
    out, new_rm, new_rv = batch_norm1d_forward(
        x, mask, gamma, beta, running_mean, running_var, training=True)
    jax.block_until_ready((out, new_rm, new_rv))

    ref_out, ref_rm, ref_rv = _ref_train(x, mask, gamma, beta, running_mean, running_var)
    assert jnp.allclose(out, ref_out, atol=1e-4, rtol=1e-4), "training output mismatch"
    assert jnp.allclose(new_rm, ref_rm, atol=1e-4, rtol=1e-4), "running_mean mismatch"
    assert jnp.allclose(new_rv, ref_rv, atol=1e-4, rtol=1e-4), "running_var mismatch"

    # --- eval-mode forward (using the freshly updated running stats) ---
    out_eval = batch_norm1d_forward(x, mask, gamma, beta, new_rm, new_rv, training=False)
    jax.block_until_ready(out_eval)
    assert jnp.allclose(out_eval, _ref_eval(x, gamma, beta, new_rm, new_rv),
                        atol=1e-4, rtol=1e-4), "eval output mismatch"

    # --- H not a multiple of 128 exercises the zero-padding path ---
    H2 = 80
    x2 = jax.random.normal(jax.random.PRNGKey(1), (N, C, H2), dtype=jnp.float32)
    mask2 = (jnp.arange(H2)[None, :] < jnp.array([[H2], [H2 // 2]])).astype(jnp.float32)
    out2, rm2, rv2 = batch_norm1d_forward(
        x2, mask2, gamma, beta, running_mean, running_var, training=True)
    jax.block_until_ready((out2, rm2, rv2))
    r2_out, r2_rm, r2_rv = _ref_train(x2, mask2, gamma, beta, running_mean, running_var)
    assert jnp.allclose(out2, r2_out, atol=1e-4, rtol=1e-4), "padded-path output mismatch"
    assert jnp.allclose(rm2, r2_rm, atol=1e-4, rtol=1e-4), "padded-path running_mean mismatch"
    assert jnp.allclose(rv2, r2_rv, atol=1e-4, rtol=1e-4), "padded-path running_var mismatch"

    print("KERNEL_OK")
</pallas_src>

<mosaic_0001>
module attributes {stable_mosaic.version = 11 : i64} {
  func.func @_moments_kernel(%arg0: i32, %arg1: i32, %arg2: memref<1x4x256xf32, #tpu.memory_space<vmem>>, %arg3: memref<1x1x256xf32, #tpu.memory_space<vmem>>, %arg4: memref<1x3x4xf32, #tpu.memory_space<vmem>>, %arg5: memref<1x2x1xf32, #tpu.memory_space<vmem>>, %arg6: memref<3x4x256xf32, #tpu.memory_space<vmem>>, %arg7: memref<2x1x256xf32, #tpu.memory_space<vmem>>) attributes {dimension_semantics = [#tpu.dimension_semantics<parallel>, #tpu.dimension_semantics<arbitrary>], iteration_bounds = array<i64: 2, 1>, scalar_prefetch = 0 : i64, scratch_operands = 2 : i64, tpu.core_type = #tpu.core_type<tc>, window_params = [{transform_indices = @transform_0, window_bounds = array<i64: 1, 4, 256>}, {transform_indices = @transform_1, window_bounds = array<i64: 1, 1, 256>}, {transform_indices = @transform_2, window_bounds = array<i64: 1, 3, 4>}, {transform_indices = @transform_3, window_bounds = array<i64: 1, 2, 1>}]} {
    %c0_i32 = arith.constant 0 : i32
    %0 = arith.cmpi eq, %arg1, %c0_i32 : i32
    %1 = arith.extui %0 : i1 to i32
    %c0_i32_0 = arith.constant 0 : i32
    %2 = arith.cmpi ne, %1, %c0_i32_0 : i32
    scf.if %2 {
      %cst = arith.constant 0.000000e+00 : f32
      %44 = vector.broadcast %cst : f32 to vector<3x4x256xf32>
      %c0_36 = arith.constant 0 : index
      %c0_37 = arith.constant 0 : index
      %c0_38 = arith.constant 0 : index
      %45 = vector.load %arg6[%c0_36, %c0_37, %c0_38] : memref<3x4x256xf32, #tpu.memory_space<vmem>>, vector<3x4x256xf32>
      tpu.vector_store %arg6[%c0_36, %c0_37, %c0_38], %44 {strides = array<i32>} : memref<3x4x256xf32, #tpu.memory_space<vmem>>, vector<3x4x256xf32>,
      %cst_39 = arith.constant 0.000000e+00 : f32
      %46 = vector.broadcast %cst_39 : f32 to vector<2x1x256xf32>
      %c0_40 = arith.constant 0 : index
      %c0_41 = arith.constant 0 : index
      %c0_42 = arith.constant 0 : index
      %47 = vector.load %arg7[%c0_40, %c0_41, %c0_42] : memref<2x1x256xf32, #tpu.memory_space<vmem>>, vector<2x1x256xf32>
      tpu.vector_store %arg7[%c0_40, %c0_41, %c0_42], %46 {strides = array<i32>} : memref<2x1x256xf32, #tpu.memory_space<vmem>>, vector<2x1x256xf32>,
    } else {
    }
    %c0 = arith.constant 0 : index
    %c0_1 = arith.constant 0 : index
    %c0_2 = arith.constant 0 : index
    %3 = vector.load %arg2[%c0, %c0_1, %c0_2] : memref<1x4x256xf32, #tpu.memory_space<vmem>>, vector<1x4x256xf32>
    %4 = vector.shape_cast %3 : vector<1x4x256xf32> to vector<4x256xf32>
    %c0_3 = arith.constant 0 : index
    %c0_4 = arith.constant 0 : index
    %c0_5 = arith.constant 0 : index
    %5 = vector.load %arg3[%c0_3, %c0_4, %c0_5] : memref<1x1x256xf32, #tpu.memory_space<vmem>>, vector<1x1x256xf32>
    %6 = vector.shape_cast %5 : vector<1x1x256xf32> to vector<1x256xf32>
    %7 = arith.mulf %6, %6 : vector<1x256xf32>
    %8 = vector.broadcast %7 : vector<1x256xf32> to vector<4x256xf32>
    %9 = arith.mulf %4, %8 : vector<4x256xf32>
    %c0_6 = arith.constant 0 : index
    %c0_7 = arith.constant 0 : index
    %c0_8 = arith.constant 0 : index
    %10 = vector.load %arg6[%c0_6, %c0_7, %c0_8] : memref<3x4x256xf32, #tpu.memory_space<vmem>>, vector<1x4x256xf32>
    %11 = vector.shape_cast %10 : vector<1x4x256xf32> to vector<4x256xf32>
    %12 = arith.addf %11, %4 : vector<4x256xf32>
    %c0_9 = arith.constant 0 : index
    %c0_10 = arith.constant 0 : index
    %c0_11 = arith.constant 0 : index
    %13 = vector.load %arg6[%c0_9, %c0_10, %c0_11] : memref<3x4x256xf32, #tpu.memory_space<vmem>>, vector<1x4x256xf32>
    %14 = vector.shape_cast %13 : vector<1x4x256xf32> to vector<4x256xf32>
    %15 = vector.shape_cast %12 : vector<4x256xf32> to vector<1x4x256xf32>
    tpu.vector_store %arg6[%c0_9, %c0_10, %c0_11], %15 {strides = array<i32>} : memref<3x4x256xf32, #tpu.memory_space<vmem>>, vector<1x4x256xf32>,
    %c1 = arith.constant 1 : index
    %c0_12 = arith.constant 0 : index
    %c0_13 = arith.constant 0 : index
    %16 = vector.load %arg6[%c1, %c0_12, %c0_13] : memref<3x4x256xf32, #tpu.memory_space<vmem>>, vector<1x4x256xf32>
    %17 = vector.shape_cast %16 : vector<1x4x256xf32> to vector<4x256xf32>
    %18 = arith.addf %17, %9 : vector<4x256xf32>
    %c1_14 = arith.constant 1 : index
    %c0_15 = arith.constant 0 : index
    %c0_16 = arith.constant 0 : index
    %19 = vector.load %arg6[%c1_14, %c0_15, %c0_16] : memref<3x4x256xf32, #tpu.memory_space<vmem>>, vector<1x4x256xf32>
    %20 = vector.shape_cast %19 : vector<1x4x256xf32> to vector<4x256xf32>
    %21 = vector.shape_cast %18 : vector<4x256xf32> to vector<1x4x256xf32>
    tpu.vector_store %arg6[%c1_14, %c0_15, %c0_16], %21 {strides = array<i32>} : memref<3x4x256xf32, #tpu.memory_space<vmem>>, vector<1x4x256xf32>,
    %c2 = arith.constant 2 : index
    %c0_17 = arith.constant 0 : index
    %c0_18 = arith.constant 0 : index
    %22 = vector.load %arg6[%c2, %c0_17, %c0_18] : memref<3x4x256xf32, #tpu.memory_space<vmem>>, vector<1x4x256xf32>
    %23 = vector.shape_cast %22 : vector<1x4x256xf32> to vector<4x256xf32>
    %24 = arith.mulf %4, %9 : vector<4x256xf32>
    %25 = arith.addf %23, %24 : vector<4x256xf32>
    %c2_19 = arith.constant 2 : index
    %c0_20 = arith.constant 0 : index
    %c0_21 = arith.constant 0 : index
    %26 = vector.load %arg6[%c2_19, %c0_20, %c0_21] : memref<3x4x256xf32, #tpu.memory_space<vmem>>, vector<1x4x256xf32>
    %27 = vector.shape_cast %26 : vector<1x4x256xf32> to vector<4x256xf32>
    %28 = vector.shape_cast %25 : vector<4x256xf32> to vector<1x4x256xf32>
    tpu.vector_store %arg6[%c2_19, %c0_20, %c0_21], %28 {strides = array<i32>} : memref<3x4x256xf32, #tpu.memory_space<vmem>>, vector<1x4x256xf32>,
    %c0_22 = arith.constant 0 : index
    %c0_23 = arith.constant 0 : index
    %c0_24 = arith.constant 0 : index
    %29 = vector.load %arg7[%c0_22, %c0_23, %c0_24] : memref<2x1x256xf32, #tpu.memory_space<vmem>>, vector<1x1x256xf32>
    %30 = vector.shape_cast %29 : vector<1x1x256xf32> to vector<1x256xf32>
    %31 = arith.addf %30, %6 : vector<1x256xf32>
    %c0_25 = arith.constant 0 : index
    %c0_26 = arith.constant 0 : index
    %c0_27 = arith.constant 0 : index
    %32 = vector.load %arg7[%c0_25, %c0_26, %c0_27] : memref<2x1x256xf32, #tpu.memory_space<vmem>>, vector<1x1x256xf32>
    %33 = vector.shape_cast %32 : vector<1x1x256xf32> to vector<1x256xf32>
    %34 = vector.shape_cast %31 : vector<1x256xf32> to vector<1x1x256xf32>
    tpu.vector_store %arg7[%c0_25, %c0_26, %c0_27], %34 {strides = array<i32>} : memref<2x1x256xf32, #tpu.memory_space<vmem>>, vector<1x1x256xf32>,
    %c1_28 = arith.constant 1 : index
    %c0_29 = arith.constant 0 : index
    %c0_30 = arith.constant 0 : index
    %35 = vector.load %arg7[%c1_28, %c0_29, %c0_30] : memref<2x1x256xf32, #tpu.memory_space<vmem>>, vector<1x1x256xf32>
    %36 = vector.shape_cast %35 : vector<1x1x256xf32> to vector<1x256xf32>
    %37 = arith.addf %36, %7 : vector<1x256xf32>
    %c1_31 = arith.constant 1 : index
    %c0_32 = arith.constant 0 : index
    %c0_33 = arith.constant 0 : index
    %38 = vector.load %arg7[%c1_31, %c0_32, %c0_33] : memref<2x1x256xf32, #tpu.memory_space<vmem>>, vector<1x1x256xf32>
    %39 = vector.shape_cast %38 : vector<1x1x256xf32> to vector<1x256xf32>
    %40 = vector.shape_cast %37 : vector<1x256xf32> to vector<1x1x256xf32>
    tpu.vector_store %arg7[%c1_31, %c0_32, %c0_33], %40 {strides = array<i32>} : memref<2x1x256xf32, #tpu.memory_space<vmem>>, vector<1x1x256xf32>,
    %c0_i32_34 = arith.constant 0 : i32
    %41 = arith.cmpi eq, %arg1, %c0_i32_34 : i32
    %42 = arith.extui %41 : i1 to i32
    %c0_i32_35 = arith.constant 0 : i32
    %43 = arith.cmpi ne, %42, %c0_i32_35 : i32
    scf.if %43 {
      %c0_36 = arith.constant 0 : index
      %c0_37 = arith.constant 0 : index
      %c0_38 = arith.constant 0 : index
      %44 = vector.load %arg6[%c0_36, %c0_37, %c0_38] : memref<3x4x256xf32, #tpu.memory_space<vmem>>, vector<3x4x256xf32>
      %cst = arith.constant dense<0.000000e+00> : vector<3x4xf32>
      %45 = vector.multi_reduction <add>, %44, %cst [2] : vector<3x4x256xf32> to vector<3x4xf32>
      %46 = vector.shape_cast %45 : vector<3x4xf32> to vector<1x3x4xf32>
      %c0_39 = arith.constant 0 : index
      %c0_40 = arith.constant 0 : index
      %c0_41 = arith.constant 0 : index
      %47 = vector.load %arg4[%c0_39, %c0_40, %c0_41] : memref<1x3x4xf32, #tpu.memory_space<vmem>>, vector<1x3x4xf32>
      tpu.vector_store %arg4[%c0_39, %c0_40, %c0_41], %46 {strides = array<i32>} : memref<1x3x4xf32, #tpu.memory_space<vmem>>, vector<1x3x4xf32>,
      %c0_42 = arith.constant 0 : index
      %c0_43 = arith.constant 0 : index
      %c0_44 = arith.constant 0 : index
      %48 = vector.load %arg7[%c0_42, %c0_43, %c0_44] : memref<2x1x256xf32, #tpu.memory_space<vmem>>, vector<2x1x256xf32>
      %cst_45 = arith.constant dense<0.000000e+00> : vector<2x1xf32>
      %49 = vector.multi_reduction <add>, %48, %cst_45 [2] : vector<2x1x256xf32> to vector<2x1xf32>
      %50 = vector.shape_cast %49 : vector<2x1xf32> to vector<1x2x1xf32>
      %c0_46 = arith.constant 0 : index
      %c0_47 = arith.constant 0 : index
      %c0_48 = arith.constant 0 : index
      %51 = vector.load %arg5[%c0_46, %c0_47, %c0_48] : memref<1x2x1xf32, #tpu.memory_space<vmem>>, vector<1x2x1xf32>
      tpu.vector_store %arg5[%c0_46, %c0_47, %c0_48], %50 {strides = array<i32>} : memref<1x2x1xf32, #tpu.memory_space<vmem>>, vector<1x2x1xf32>,
    } else {
    }
    return
  }
  func.func @transform_0(%arg0: i32, %arg1: i32) -> (i32, i32, i32) {
    %c0_i32 = arith.constant 0 : i32
    %c0_i32_0 = arith.constant 0 : i32
    return %arg0, %c0_i32, %arg1 : i32, i32, i32
  }
  func.func @transform_1(%arg0: i32, %arg1: i32) -> (i32, i32, i32) {
    %c0_i32 = arith.constant 0 : i32
    %c0_i32_0 = arith.constant 0 : i32
    return %arg0, %c0_i32, %arg1 : i32, i32, i32
  }
  func.func @transform_2(%arg0: i32, %arg1: i32) -> (i32, i32, i32) {
    %c0_i32 = arith.constant 0 : i32
    %c0_i32_0 = arith.constant 0 : i32
    %c0_i32_1 = arith.constant 0 : i32
    return %arg0, %c0_i32, %c0_i32_0 : i32, i32, i32
  }
  func.func @transform_3(%arg0: i32, %arg1: i32) -> (i32, i32, i32) {
    %c0_i32 = arith.constant 0 : i32
    %c0_i32_0 = arith.constant 0 : i32
    %c0_i32_1 = arith.constant 0 : i32
    return %arg0, %c0_i32, %c0_i32_0 : i32, i32, i32
  }
}

module attributes {stable_mosaic.version = 11 : i64} {
  func.func @_apply_kernel(%arg0: i32, %arg1: i32, %arg2: memref<8x256xf32, #tpu.memory_space<vmem>>, %arg3: memref<8x1xf32, #tpu.memory_space<vmem>>, %arg4: memref<8x1xf32, #tpu.memory_space<vmem>>, %arg5: memref<8x256xf32, #tpu.memory_space<vmem>>) attributes {dimension_semantics = [#tpu.dimension_semantics<parallel>, #tpu.dimension_semantics<parallel>], iteration_bounds = array<i64: 1, 1>, scalar_prefetch = 0 : i64, scratch_operands = 0 : i64, tpu.core_type = #tpu.core_type<tc>, window_params = [{transform_indices = @transform_0, window_bounds = array<i64: 8, 256>}, {transform_indices = @transform_1, window_bounds = array<i64: 8, 1>}, {transform_indices = @transform_2, window_bounds = array<i64: 8, 1>}, {transform_indices = @transform_3, window_bounds = array<i64: 8, 256>}]} {
    %c0 = arith.constant 0 : index
    %c0_0 = arith.constant 0 : index
    %0 = vector.load %arg2[%c0, %c0_0] : memref<8x256xf32, #tpu.memory_space<vmem>>, vector<8x256xf32>
    %c0_1 = arith.constant 0 : index
    %c0_2 = arith.constant 0 : index
    %1 = vector.load %arg3[%c0_1, %c0_2] : memref<8x1xf32, #tpu.memory_space<vmem>>, vector<8x1xf32>
    %2 = vector.broadcast %1 : vector<8x1xf32> to vector<8x256xf32>
    %3 = arith.mulf %0, %2 : vector<8x256xf32>
    %c0_3 = arith.constant 0 : index
    %c0_4 = arith.constant 0 : index
    %4 = vector.load %arg4[%c0_3, %c0_4] : memref<8x1xf32, #tpu.memory_space<vmem>>, vector<8x1xf32>
    %5 = vector.broadcast %4 : vector<8x1xf32> to vector<8x256xf32>
    %6 = arith.addf %3, %5 : vector<8x256xf32>
    %c0_5 = arith.constant 0 : index
    %c0_6 = arith.constant 0 : index
    %7 = vector.load %arg5[%c0_5, %c0_6] : memref<8x256xf32, #tpu.memory_space<vmem>>, vector<8x256xf32>
    tpu.vector_store %arg5[%c0_5, %c0_6], %6 {strides = array<i32>} : memref<8x256xf32, #tpu.memory_space<vmem>>, vector<8x256xf32>,
    return
  }
  func.func @transform_0(%arg0: i32, %arg1: i32) -> (i32, i32) {
    %c0_i32 = arith.constant 0 : i32
    return %arg0, %arg1 : i32, i32
  }
  func.func @transform_1(%arg0: i32, %arg1: i32) -> (i32, i32) {
    %c0_i32 = arith.constant 0 : i32
    %c0_i32_0 = arith.constant 0 : i32
    return %arg0, %c0_i32 : i32, i32
  }
  func.func @transform_2(%arg0: i32, %arg1: i32) -> (i32, i32) {
    %c0_i32 = arith.constant 0 : i32
    %c0_i32_0 = arith.constant 0 : i32
    return %arg0, %c0_i32 : i32, i32
  }
  func.func @transform_3(%arg0: i32, %arg1: i32) -> (i32, i32) {
    %c0_i32 = arith.constant 0 : i32
    return %arg0, %arg1 : i32, i32
  }
}

</mosaic_0001>

<llo_original>
// kernel: tile.0
$region0: #{tile.0}
  %s0 = inlined_call_operand.vmem [shape: f32[2,4], index: 0, kind: input, shape index: {}]
  %s1 = inlined_call_operand.vmem [shape: f32[8,1], index: 1, kind: output, shape index: {}]
  $region1: #{tile.0} parent=0
    #allocation0 [shape = 'u8[4096]{0}', space=vmem, size = 0x1000, scoped, tag = 'scoped mem for input reshape']
    %s3 = sshll.u32 1, 2
    %s4 = ssub.s32 %s3, 1
    %v5 = vld [vmem:[%s0] sm:%s4]
    %6 = vst [vmem:[#allocation0] sm:%s4] %v5
    %v7 = vld [vmem:[#allocation0] sm:$0x3]
    %vm8 = vcmask 7168
    %9 = vst.msk [vmem:[%s1] ss:$4 sm:$0x3] %vm8, %v7
    %v10 = vld [vmem:[#allocation0] sm:$0x3]
    %11 = vrot.lane.b32.xlu0 %v10, 127
    %v12 = vpop.permute.xlu0 %11
    %vm13 = vcmask 7168
    %s14 = scalar_lea.vmem %s1, 1
    %15 = vst.msk [vmem:[%s14] ss:$4 sm:$0x3] %vm13, %v12
    %v16 = vld [vmem:[#allocation0] sm:$0x3]
    %17 = vrot.lane.b32.xlu0 %v16, 126
    %v18 = vpop.permute.xlu0 %17
    %vm19 = vcmask 7168
    %s20 = scalar_lea.vmem %s1, 2
    %21 = vst.msk [vmem:[%s20] ss:$4 sm:$0x3] %vm19, %v18
    %v22 = vld [vmem:[#allocation0] sm:$0x3]
    %23 = vrot.lane.b32.xlu0 %v22, 125
    %v24 = vpop.permute.xlu0 %23
    %vm25 = vcmask 7168
    %s26 = scalar_lea.vmem %s1, 3
    %27 = vst.msk [vmem:[%s26] ss:$4 sm:$0x3] %vm25, %v24

// kernel: tile.11
$region0: #{tile.11}
  #allocation0 [shape = 's32[1]{0}', space=sflag, size = 0x4, scoped, tag = 'scoped memory for tile.11']
  %s0 = inlined_call_operand.vmem [shape: f32[4], index: 0, kind: input, shape index: {}]
  %s1 = inlined_call_operand.vmem [shape: f32[2,4], index: 1, kind: output, shape index: {}]
  // Predicated region
  $region2: #{tile.11} parent=0 // pred_check
    _
  $region3: #{tile.11} parent=0 // pred_check_branch
    %3 = sbr.rel (0) target = $region5
  $region4: #{tile.11} parent=0 // pred_region
    _
  $region5: #{tile.11} parent=0 // pred_fallthru
    _
  %v4 = vld [vmem:[%s0] ss:$0 sm:$0xff]
  %5 = vst [vmem:[%s1] sm:$0x3] %v4

// kernel: batch_norm1d_forward.2
$region0: #{batch_norm1d_forward.2}
  #allocation0 [shape = 'u32[]', space=smem, size = 0x4, offset = 0x4, fixed_abs, tag = 'smem constant byte address 0x4 - core index']
  #allocation1 [shape = 'u32[144,128]{1,0:T(1,128)}', space=vmem, size = 0x12000, scoped, tag = 'internal scratch']
  #allocation2 [shape = 'f32[3,4,256]{2,1,0:T(4,128)}', space=vmem, size = 0x3000, scoped, tag = 'scratch operand']
  #allocation3 [shape = 'f32[2,1,256]{2,1,0:T(1,128)}', space=vmem, size = 0x800, scoped, tag = 'scratch operand']
  %s0 = inlined_call_operand.vmem [shape: f32[2,4,256], index: 0, kind: input, shape index: {}]
  %s1 = inlined_call_operand.vmem [shape: f32[2,1,256], index: 1, kind: input, shape index: {}]
  %s2 = inlined_call_operand.vmem [shape: f32[2,3,4], index: 2, kind: output, shape index: {0}]
  %s3 = inlined_call_operand.vmem [shape: f32[2,2,1], index: 3, kind: output, shape index: {1}]
  %4 = xla_tuple %s2, %s3
  %s5 = sld [smem:[#allocation0]]
  $region57: #{batch_norm1d_forward.2} parent=0
    _
  %s7 = ssub.s32 1, %s5
  %s8 = scalar_select 0, %s7, %s5
  loop: start=0, step=1, limit=4
  $region2: #{batch_norm1d_forward.2} parent=0 // loop_pre_header
    _
  $region3: #{batch_norm1d_forward.2} parent=0 // loop_header
    %s10 = sphi 0, %s14
    %p11 = scmp.ge.s32.totalorder %s10, 4
    %s17 = sphi 0, %s29
    %s18 = sphi 0, %s25
    %s19 = sphi 0, %s17
    %s20 = sphi 0, %s18
    %s21 = sphi 0, %s19
    %s22 = sphi 0, %s20
    %s34 = sphi 0, %s36
    %s37 = sphi 0, %s34
    %s38 = sphi 0, %s37
    %s54 = sphi 0, %s38
    %s62 = sphi 0, %s64
    %s65 = sphi 0, %s62
    %s66 = sphi 0, %s65
    %s82 = sphi 0, %s66
    %s88 = sphi 0, %s90
    %s91 = sphi 0, %s88
    %s92 = sphi 0, %s91
    %s108 = sphi 0, %s92
    %s114 = sphi 0, %s116
    %s117 = sphi 0, %s114
    %s118 = sphi 0, %s117
    %s134 = sphi 0, %s118
  $region4: #{batch_norm1d_forward.2} parent=0 // loop_header_branch
    %13 = sbr.rel (%p11) target = $region8
  $region5: #{batch_norm1d_forward.2} parent=0 // loop_body
    %s15 = ssub.s32 %s10, 1
    %s16 = ssub.s32 %s10, 2
    %s23 = sadd.s32 1, %s18
    %p24 = scmp.ge.s32.totalorder %s23, 1
    %s25 = scalar_select %p24, 0, %s23
    %s26 = sadd.s32 1, %s17
    %s27 = scalar_select %p24, %s26, %s17
    %p28 = scmp.ge.s32.totalorder %s27, 2
    %s29 = scalar_select %p28, 0, %s27
    %s30 = ssub.s32 %s17, %s29
    %s31 = ssub.s32 %s18, %s25
    %s32 = sor.u32 %s30, %s31
    %p33 = scmp.eq.s32.totalorder %s32, 0
    %s35 = sadd.s32 %s34, 1
    %s36 = scalar_select %p33, %s34, %s35
    %p39 = pneg %p33
    %p40 = scmp.eq.s32.totalorder %s10, 1
    %p41 = por %p39, %p40
    %p42 = scmp.ne.s32.totalorder %s34, %s37
    %p43 = scmp.eq.s32.totalorder %s10, 0
    %p44 = por %p42, %p43
    %p45 = scmp.ne.s32.totalorder %s34, %s37
    %p46 = scmp.eq.s32.totalorder %s15, 1
    %p47 = por %p45, %p46
    %p48 = scmp.ne.s32.totalorder %s37, %s38
    %p49 = scmp.eq.s32.totalorder %s15, 0
    %p50 = por %p48, %p49
    %p51 = scmp.ne.s32.totalorder %s37, %s38
    %p52 = scmp.eq.s32.totalorder %s16, 1
    %p53 = por %p51, %p52
    %p55 = scmp.ne.s32.totalorder %s38, %s54
    %p56 = scmp.eq.s32.totalorder %s16, 0
    %p57 = por %p55, %p56
    %s58 = ssub.s32 %s17, %s29
    %s59 = ssub.s32 %s18, %s25
    %s60 = sor.u32 %s58, %s59
    %p61 = scmp.eq.s32.totalorder %s60, 0
    %s63 = sadd.s32 %s62, 1
    %s64 = scalar_select %p61, %s62, %s63
    %p67 = pneg %p61
    %p68 = scmp.eq.s32.totalorder %s10, 1
    %p69 = por %p67, %p68
    %p70 = scmp.ne.s32.totalorder %s62, %s65
    %p71 = scmp.eq.s32.totalorder %s10, 0
    %p72 = por %p70, %p71
    %p73 = scmp.ne.s32.totalorder %s62, %s65
    %p74 = scmp.eq.s32.totalorder %s15, 1
    %p75 = por %p73, %p74
    %p76 = scmp.ne.s32.totalorder %s65, %s66
    %p77 = scmp.eq.s32.totalorder %s15, 0
    %p78 = por %p76, %p77
    %p79 = scmp.ne.s32.totalorder %s65, %s66
    %p80 = scmp.eq.s32.totalorder %s16, 1
    %p81 = por %p79, %p80
    %p83 = scmp.ne.s32.totalorder %s66, %s82
    %p84 = scmp.eq.s32.totalorder %s16, 0
    %p85 = por %p83, %p84
    %s86 = ssub.s32 %s17, %s29
    %p87 = scmp.eq.s32.totalorder %s86, 0
    %s89 = sadd.s32 %s88, 1
    %s90 = scalar_select %p87, %s88, %s89
    %p93 = pneg %p87
    %p94 = scmp.eq.s32.totalorder %s10, 1
    %p95 = por %p93, %p94
    %p96 = scmp.ne.s32.totalorder %s88, %s91
    %p97 = scmp.eq.s32.totalorder %s10, 0
    %p98 = por %p96, %p97
    %p99 = scmp.ne.s32.totalorder %s88, %s91
    %p100 = scmp.eq.s32.totalorder %s15, 1
    %p101 = por %p99, %p100
    %p102 = scmp.ne.s32.totalorder %s91, %s92
    %p103 = scmp.eq.s32.totalorder %s15, 0
    %p104 = por %p102, %p103
    %p105 = scmp.ne.s32.totalorder %s91, %s92
    %p106 = scmp.eq.s32.totalorder %s16, 1
    %p107 = por %p105, %p106
    %p109 = scmp.ne.s32.totalorder %s92, %s108
    %p110 = scmp.eq.s32.totalorder %s16, 0
    %p111 = por %p109, %p110
    %s112 = ssub.s32 %s17, %s29
    %p113 = scmp.eq.s32.totalorder %s112, 0
    %s115 = sadd.s32 %s114, 1
    %s116 = scalar_select %p113, %s114, %s115
    %p119 = pneg %p113
    %p120 = scmp.eq.s32.totalorder %s10, 1
    %p121 = por %p119, %p120
    %p122 = scmp.ne.s32.totalorder %s114, %s117
    %p123 = scmp.eq.s32.totalorder %s10, 0
    %p124 = por %p122, %p123
    %p125 = scmp.ne.s32.totalorder %s114, %s117
    %p126 = scmp.eq.s32.totalorder %s15, 1
    %p127 = por %p125, %p126
    %p128 = scmp.ne.s32.totalorder %s117, %s118
    %p129 = scmp.eq.s32.totalorder %s15, 0
    %p130 = por %p128, %p129
    %p131 = scmp.ne.s32.totalorder %s117, %s118
    %p132 = scmp.eq.s32.totalorder %s16, 1
    %p133 = por %p131, %p132
    %p135 = scmp.ne.s32.totalorder %s118, %s134
    %p136 = scmp.eq.s32.totalorder %s16, 0
    %p137 = por %p135, %p136
    %p138 = scmp.le.s32.totalorder 1, %s10
    %p139 = scmp.lt.s32.totalorder %s10, 3
    %p140 = pnand %p138, %p139
    %p141 = pneg %p140
    // Predicated region
    $region9: #{batch_norm1d_forward.2} parent=5 // pred_check
      _
    $region10: #{batch_norm1d_forward.2} parent=5 // pred_check_branch
      %143 = sbr.rel (%p140) target = $region12
    $region11: #{batch_norm1d_forward.2} parent=5 // pred_region
      %s144 = ssub.s32 %s10, 1
    $region12: #{batch_norm1d_forward.2} parent=5 // pred_fallthru
      _
    %p145 = scmp.lt.s32.totalorder %s10, 2
    // Predicated region
    $region13: #{batch_norm1d_forward.2} parent=5 // pred_check
      %p146 = pneg %p145
    $region14: #{batch_norm1d_forward.2} parent=5 // pred_check_branch
      %148 = sbr.rel (%p146) target = $region16
    $region15: #{batch_norm1d_forward.2} parent=5 // pred_region
      // Predicated region
      $region17: #{batch_norm1d_forward.2} parent=15 // pred_check
        %p149 = pneg %p44
      $region18: #{batch_norm1d_forward.2} parent=15 // pred_check_branch
        %151 = sbr.rel (%p149) target = $region20
      $region19: #{batch_norm1d_forward.2} parent=15 // pred_region
        %s152 = smul.u32 2, %s18
        %p153 = scmp.lt.s32.totalorder %s17, 1
        %s154 = scalar_select %p153, %s17, 1
        %p155 = scmp.lt.s32.totalorder %s152, 1
        %s156 = scalar_select %p155, %s152, 1
        %s157 = smul.addr %s154, 2
        %s158 = sadd.s32 %s156, %s157
        %s159 = smul.addr %s158, 4
        %s160 = scalar_lea.vmem %s0, %s159
        %s161 = smul.u32 2, %s18
      $region20: #{batch_norm1d_forward.2} parent=15 // pred_fallthru
        _
      // Predicated region
      $region21: #{batch_norm1d_forward.2} parent=15 // pred_check
        %p162 = pneg %p72
      $region22: #{batch_norm1d_forward.2} parent=15 // pred_check_branch
        %164 = sbr.rel (%p162) target = $region24
      $region23: #{batch_norm1d_forward.2} parent=15 // pred_region
        %s165 = smul.u32 2, %s18
        %p166 = scmp.lt.s32.totalorder %s17, 1
        %s167 = scalar_select %p166, %s17, 1
        %p168 = scmp.lt.s32.totalorder %s165, 1
        %s169 = scalar_select %p168, %s165, 1
        %s170 = smul.addr %s167, 2
        %s171 = sadd.s32 %s169, %s170
        %s172 = scalar_lea.vmem %s1, %s171
        %s173 = smul.u32 2, %s18
      $region24: #{batch_norm1d_forward.2} parent=15 // pred_fallthru
        _
    $region16: #{batch_norm1d_forward.2} parent=5 // pred_fallthru
      _
    %p174 = scmp.le.s32.totalorder 1, %s10
    %p175 = scmp.lt.s32.totalorder %s10, 3
    %p176 = pnand %p174, %p175
    %p177 = pneg %p176
    // Predicated region
    $region25: #{batch_norm1d_forward.2} parent=5 // pred_check
      _
    $region26: #{batch_norm1d_forward.2} parent=5 // pred_check_branch
      %179 = sbr.rel (%p176) target = $region28
    $region27: #{batch_norm1d_forward.2} parent=5 // pred_region
      %s180 = ssub.s32 %s10, 1
      %s181 = smul.u32 2, %s20
      %p182 = scmp.lt.s32.totalorder %s19, 1
      %s183 = scalar_select %p182, %s19, 1
      %p184 = scmp.lt.s32.totalorder %s181, 1
      %s185 = scalar_select %p184, %s181, 1
      %s186 = smul.addr %s183, 2
      %s187 = sadd.s32 %s185, %s186
      %s188 = smul.addr %s187, 4
      %s189 = scalar_lea.vmem %s0, %s188
      %p190 = pneg %p50
      %p191 = pneg %p47
      %s192 = smul.u32 2, %s20
      %p193 = scmp.lt.s32.totalorder %s19, 1
      %s194 = scalar_select %p193, %s19, 1
      %p195 = scmp.lt.s32.totalorder %s192, 1
      %s196 = scalar_select %p195, %s192, 1
      %s197 = smul.addr %s194, 2
      %s198 = sadd.s32 %s196, %s197
      %s199 = scalar_lea.vmem %s1, %s198
      %p200 = pneg %p78
      %p201 = pneg %p75
      %p202 = pneg %p104
      %p203 = pneg %p101
      %p204 = scmp.lt.s32.totalorder %s19, 1
      %s205 = scalar_select %p204, %s19, 1
      %s206 = smul.addr %s205, 4
      %s207 = scalar_lea.vmem %s2, %s206
      %p208 = pneg %p130
      %p209 = pneg %p127
      %p210 = scmp.lt.s32.totalorder %s19, 1
      %s211 = scalar_select %p210, %s19, 1
      %s212 = smul.addr %s211, 2
      %s213 = scalar_lea.vmem %s3, %s212
      %s214 = smul.u32 2, %s20
      %p215 = scmp.lt.s32.totalorder %s19, 1
      %s216 = scalar_select %p215, %s19, 1
      %p217 = scmp.lt.s32.totalorder %s214, 1
      %s218 = scalar_select %p217, %s214, 1
      %s219 = smul.addr %s216, 2
      %s220 = sadd.s32 %s218, %s219
      %s221 = smul.addr %s220, 4
      %s222 = scalar_lea.vmem %s0, %s221
      %s223 = smul.u32 2, %s20
      %s224 = smul.u32 2, %s20
      %p225 = scmp.lt.s32.totalorder %s19, 1
      %s226 = scalar_select %p225, %s19, 1
      %p227 = scmp.lt.s32.totalorder %s224, 1
      %s228 = scalar_select %p227, %s224, 1
      %s229 = smul.addr %s226, 2
      %s230 = sadd.s32 %s228, %s229
      %s231 = scalar_lea.vmem %s1, %s230
      %s232 = smul.u32 2, %s20
      %p233 = scmp.lt.s32.totalorder %s19, 1
      %s234 = scalar_select %p233, %s19, 1
      %s235 = smul.addr %s234, 4
      %s236 = scalar_lea.vmem %s2, %s235
      %p237 = scmp.lt.s32.totalorder %s19, 1
      %s238 = scalar_select %p237, %s19, 1
      %s239 = smul.addr %s238, 2
      %s240 = scalar_lea.vmem %s3, %s239
      %p241 = scmp.eq.s32.totalorder %s20, 0
      // Predicated region
      $region29: #{batch_norm1d_forward.2} parent=27 // pred_check
        %p242 = pneg %p241
      $region30: #{batch_norm1d_forward.2} parent=27 // pred_check_branch
        %244 = sbr.rel (%p242) target = $region32
      $region31: #{batch_norm1d_forward.2} parent=27 // pred_region
        %245 = vst [vmem:[#allocation2] sm:$0xff] 0.0
        %246 = vst [vmem:[#allocation2 + $0x8] sm:$0xff] 0.0
        %247 = vst [vmem:[#allocation2 + $0x10] sm:$0xff] 0.0
        %v248 = vlaneseq
        %vm249 = vcmp.ge.s32.totalorder %v248, 0
        %vm250 = vcmp.lt.s32.totalorder %v248, 256
        %vm251 = vmand %vm249, %vm250
        %252 = vst.msk [vmem:[#allocation3] sm:$0x3] %vm251, 0.0
        %253 = vst.msk [vmem:[#allocation3 + $0x2] sm:$0x3] %vm251, 0.0
      $region32: #{batch_norm1d_forward.2} parent=27 // pred_fallthru
        _
      %v254 = vld [vmem:[%s222] sm:$0xff]
      %v255 = vld [vmem:[%s231] sm:$0x3]
      %v256 = vmul.f32 %v255, %v255
      %v258 = vlaneseq
      %v259 = vshrl.u32 %v258, 7
      %v260 = vsub.s32 0, %v259
      %v261 = vrot.slane %v256, %v260
      %v262 = vlaneseq
      %v263 = vshrl.u32 %v262, 7
      %v264 = vsub.s32 1, %v263
      %v265 = vrot.slane %v256, %v264
      %v266 = vcombine.low %v261, %v265
      %v268 = vmul.f32 %v254, %v266
      %v269 = vld [vmem:[#allocation2] sm:$0xff]
      %v270 = vadd.f32 %v269, %v254
      %271 = vst [vmem:[#allocation2] sm:$0xff] %v270
      %s272 = scalar_lea.vmem [#allocation2], 8
      %v273 = vld [vmem:[%s272] sm:$0xff]
      %v274 = vadd.f32 %v273, %v268
      %275 = vst [vmem:[%s272] sm:$0xff] %v274
      %s276 = scalar_lea.vmem [#allocation2], 16
      %v277 = vld [vmem:[%s276] sm:$0xff]
      %v278 = vmul.f32 %v254, %v268
      %v279 = vadd.f32 %v277, %v278
      %280 = vst [vmem:[%s276] sm:$0xff] %v279
      %v281 = vld [vmem:[#allocation3] sm:$0x3]
      %v282 = vadd.f32 %v281, %v255
      %v283 = vlaneseq
      %vm284 = vcmp.ge.s32.totalorder %v283, 0
      %vm285 = vcmp.lt.s32.totalorder %v283, 256
      %vm286 = vmand %vm284, %vm285
      %287 = vst.msk [vmem:[#allocation3] sm:$0x3] %vm286, %v282
      %s288 = scalar_lea.vmem [#allocation3], 2
      %v289 = vld [vmem:[%s288] sm:$0x3]
      %v290 = vadd.f32 %v289, %v256
      %291 = vst.msk [vmem:[%s288] sm:$0x3] %vm286, %v290
      // Predicated region
      $region33: #{batch_norm1d_forward.2} parent=27 // pred_check
        %p292 = pneg %p241
      $region34: #{batch_norm1d_forward.2} parent=27 // pred_check_branch
        %294 = sbr.rel (%p292) target = $region36
      $region35: #{batch_norm1d_forward.2} parent=27 // pred_region
        %v295 = vld [vmem:[#allocation2] sm:$0xff]
        %v296 = vld [vmem:[#allocation2 + $0x8] sm:$0xff]
        %v297 = vld [vmem:[#allocation2 + $0x10] sm:$0xff]
        %v301 = vcombine.high %v295, %v295
        %v302 = vcombine.high %v296, %v296
        %v303 = vcombine.high %v297, %v297
        %vm307 = vcmask 1043456
        %v308 = vsel %vm307, %v295, 0.0
        %v309 = vsel %vm307, %v301, 0.0
        %v310 = vadd.f32 %v308, %v309
        %311 = vadd.xlane.f32.xlu0 %v310
        %v312 = vpop.xlane.xlu0 %311
        %v313 = vsel %vm307, %v296, 0.0
        %v314 = vsel %vm307, %v302, 0.0
        %v315 = vadd.f32 %v313, %v314
        %316 = vadd.xlane.f32.xlu0 %v315
        %v317 = vpop.xlane.xlu0 %316
        %v318 = vsel %vm307, %v297, 0.0
        %v319 = vsel %vm307, %v303, 0.0
        %v320 = vadd.f32 %v318, %v319
        %321 = vadd.xlane.f32.xlu0 %v320
        %v322 = vpop.xlane.xlu0 %321
        %v326 = vlaneseq
        %v327 = vand.u32 %v326, 127
        %v328 = vlaneseq
        %v329 = vshrl.u32 %v328, 7
        %v330 = vsub.s32 %v327, %v329
        %v331 = vrot.slane %v312, %v330
        %v332 = vlaneseq
        %v333 = vshrl.u32 %v332, 7
        %v334 = vsub.s32 %v327, %v333
        %v335 = vrot.slane %v317, %v334
        %v336 = vlaneseq
        %v337 = vshrl.u32 %v336, 7
        %v338 = vsub.s32 %v327, %v337
        %v339 = vrot.slane %v322, %v338
        %vm340 = vcmask 1041409
        %v341 = vsel %vm340, %v335, %v331
        %vm342 = vcmask 1042434
        %v343 = vsel %vm342, %v339, %v341
        %vm345 = vcmask 26624
        %346 = vst.msk [vmem:[%s236] sm:$0x7] %vm345, %v343
        %v347 = vld [vmem:[#allocation3] sm:$0x3]
        %v348 = vld [vmem:[#allocation3 + $0x2] sm:$0x3]
        %v351 = vlaneseq
        %v352 = vshrl.u32 %v351, 7
        %v353 = vsub.s32 0, %v352
        %v354 = vrot.slane %v347, %v353
        %v355 = vlaneseq
        %v356 = vshrl.u32 %v355, 7
        %v357 = vsub.s32 1, %v356
        %v358 = vrot.slane %v347, %v357
        %v359 = vlaneseq
        %v360 = vshrl.u32 %v359, 7
        %v361 = vsub.s32 0, %v360
        %v362 = vrot.slane %v348, %v361
        %v363 = vlaneseq
        %v364 = vshrl.u32 %v363, 7
        %v365 = vsub.s32 1, %v364
        %v366 = vrot.slane %v348, %v365
        %vm371 = vcmask 1040384
        %v372 = vsel %vm371, %v354, 0.0
        %v373 = vsel %vm371, %v358, 0.0
        %v374 = vadd.f32 %v372, %v373
        %375 = vadd.xlane.f32.xlu0 %v374
        %v376 = vpop.xlane.xlu0 %375
        %v377 = vsel %vm371, %v362, 0.0
        %v378 = vsel %vm371, %v366, 0.0
        %v379 = vadd.f32 %v377, %v378
        %380 = vadd.xlane.f32.xlu0 %v379
        %v381 = vpop.xlane.xlu0 %380
        %v384 = vrot.slane %v381, 7
        %v385 = vsel %vm340, %v384, %v376
        %vm387 = vcmask 1024
        %388 = vst.msk [vmem:[%s240] sm:$0x3] %vm387, %v385
      $region36: #{batch_norm1d_forward.2} parent=27 // pred_fallthru
        _
      %p389 = scmp.lt.s32.totalorder %s19, 1
      %s390 = scalar_select %p389, %s19, 1
      %s391 = smul.addr %s390, 4
      %s392 = scalar_lea.vmem %s2, %s391
      %p393 = scmp.lt.s32.totalorder %s19, 1
      %s394 = scalar_select %p393, %s19, 1
      %s395 = smul.addr %s394, 2
      %s396 = scalar_lea.vmem %s3, %s395
      // Predicated region
      $region37: #{batch_norm1d_forward.2} parent=27 // pred_check
        %p397 = pneg %p101
      $region38: #{batch_norm1d_forward.2} parent=27 // pred_check_branch
        %399 = sbr.rel (%p397) target = $region40
      $region39: #{batch_norm1d_forward.2} parent=27 // pred_region
        _
      $region40: #{batch_norm1d_forward.2} parent=27 // pred_fallthru
        _
      // Predicated region
      $region41: #{batch_norm1d_forward.2} parent=27 // pred_check
        %p400 = pneg %p127
      $region42: #{batch_norm1d_forward.2} parent=27 // pred_check_branch
        %402 = sbr.rel (%p400) target = $region44
      $region43: #{batch_norm1d_forward.2} parent=27 // pred_region
        _
      $region44: #{batch_norm1d_forward.2} parent=27 // pred_fallthru
        _
    $region28: #{batch_norm1d_forward.2} parent=5 // pred_fallthru
      _
    %p403 = scmp.le.s32.totalorder 2, %s10
    // Predicated region
    $region45: #{batch_norm1d_forward.2} parent=5 // pred_check
      %p404 = pneg %p403
    $region46: #{batch_norm1d_forward.2} parent=5 // pred_check_branch
      %406 = sbr.rel (%p404) target = $region48
    $region47: #{batch_norm1d_forward.2} parent=5 // pred_region
      %s407 = ssub.s32 %s10, 2
      // Predicated region
      $region49: #{batch_norm1d_forward.2} parent=47 // pred_check
        %p408 = pneg %p107
      $region50: #{batch_norm1d_forward.2} parent=47 // pred_check_branch
        %410 = sbr.rel (%p408) target = $region52
      $region51: #{batch_norm1d_forward.2} parent=47 // pred_region
        %p411 = scmp.lt.s32.totalorder %s21, 1
        %s412 = scalar_select %p411, %s21, 1
        %s413 = smul.addr %s412, 4
        %s414 = scalar_lea.vmem %s2, %s413
      $region52: #{batch_norm1d_forward.2} parent=47 // pred_fallthru
        _
      // Predicated region
      $region53: #{batch_norm1d_forward.2} parent=47 // pred_check
        %p415 = pneg %p133
      $region54: #{batch_norm1d_forward.2} parent=47 // pred_check_branch
        %417 = sbr.rel (%p415) target = $region56
      $region55: #{batch_norm1d_forward.2} parent=47 // pred_region
        %p418 = scmp.lt.s32.totalorder %s21, 1
        %s419 = scalar_select %p418, %s21, 1
        %s420 = smul.addr %s419, 2
        %s421 = scalar_lea.vmem %s3, %s420
      $region56: #{batch_norm1d_forward.2} parent=47 // pred_fallthru
        _
    $region48: #{batch_norm1d_forward.2} parent=5 // pred_fallthru
      _
  $region6: #{batch_norm1d_forward.2} parent=0 // loop_footer
    %s14 = sadd.s32 1, %s10
  $region7: #{batch_norm1d_forward.2} parent=0 // loop_footer_branch
    %9 = sbr.rel target = $region3
  $region8: #{batch_norm1d_forward.2} parent=0 // loop_exit
    _

// kernel: batch_norm1d_forward.3
$region0: #{batch_norm1d_forward.3}
  #allocation0 [shape = 'u32[]', space=smem, size = 0x4, offset = 0x4, fixed_abs, tag = 'smem constant byte address 0x4 - core index']
  #allocation1 [shape = 'u32[144,128]{1,0:T(1,128)}', space=vmem, size = 0x12000, scoped, tag = 'internal scratch']
  %s0 = inlined_call_operand.vmem [shape: f32[8,256], index: 0, kind: input, shape index: {}]
  %s1 = inlined_call_operand.vmem [shape: f32[8,1], index: 1, kind: input, shape index: {}]
  %s2 = inlined_call_operand.vmem [shape: f32[8,1], index: 2, kind: input, shape index: {}]
  %s3 = inlined_call_operand.vmem [shape: f32[8,256], index: 3, kind: output, shape index: {}]
  %s4 = sld [smem:[#allocation0]]
  $region22: #{batch_norm1d_forward.3} parent=0
    _
  %s6 = ssub.s32 1, %s4
  %s7 = scalar_select 0, %s6, %s4
  // Predicated region
  $region2: #{batch_norm1d_forward.3} parent=0 // pred_check
    _
  $region3: #{batch_norm1d_forward.3} parent=0 // pred_check_branch
    %9 = sbr.rel (0) target = $region5
  $region4: #{batch_norm1d_forward.3} parent=0 // pred_region
    _
  $region5: #{batch_norm1d_forward.3} parent=0 // pred_fallthru
    _
  // Predicated region
  $region6: #{batch_norm1d_forward.3} parent=0 // pred_check
    _
  $region7: #{batch_norm1d_forward.3} parent=0 // pred_check_branch
    %11 = sbr.rel (0) target = $region9
  $region8: #{batch_norm1d_forward.3} parent=0 // pred_region
    _
  $region9: #{batch_norm1d_forward.3} parent=0 // pred_fallthru
    _
  // Predicated region
  $region10: #{batch_norm1d_forward.3} parent=0 // pred_check
    _
  $region11: #{batch_norm1d_forward.3} parent=0 // pred_check_branch
    %13 = sbr.rel (0) target = $region13
  $region12: #{batch_norm1d_forward.3} parent=0 // pred_region
    _
  $region13: #{batch_norm1d_forward.3} parent=0 // pred_fallthru
    _
  %v14 = vld [vmem:[%s0] sm:$0xff]
  %v15 = vld [vmem:[%s0 + $0x8] sm:$0xff]
  %v16 = vld [vmem:[%s1] sm:$0xff]
  %18 = vset.pattern.permute.xlu0 0
  %19 = vperm.xlu0 %18, %v16
  %v20 = vpop.permute.xlu0 %19
  %v22 = vmul.f32 %v14, %v20
  %v23 = vmul.f32 %v15, %v20
  %v24 = vld [vmem:[%s2] sm:$0xff]
  %26 = vset.pattern.permute.xlu0 0
  %27 = vperm.xlu0 %26, %v24
  %v28 = vpop.permute.xlu0 %27
  %v30 = vadd.f32 %v22, %v28
  %v31 = vadd.f32 %v23, %v28
  %32 = vst [vmem:[%s3] sm:$0xff] %v30
  %33 = vst [vmem:[%s3 + $0x8] sm:$0xff] %v31
  // Predicated region
  $region14: #{batch_norm1d_forward.3} parent=0 // pred_check
    _
  $region15: #{batch_norm1d_forward.3} parent=0 // pred_check_branch
    %35 = sbr.rel (0) target = $region17
  $region16: #{batch_norm1d_forward.3} parent=0 // pred_region
    _
  $region17: #{batch_norm1d_forward.3} parent=0 // pred_fallthru
    _
  // Predicated region
  $region18: #{batch_norm1d_forward.3} parent=0 // pred_check
    _
  $region19: #{batch_norm1d_forward.3} parent=0 // pred_check_branch
    %37 = sbr.rel (0) target = $region21
  $region20: #{batch_norm1d_forward.3} parent=0 // pred_region
    _
  $region21: #{batch_norm1d_forward.3} parent=0 // pred_fallthru
    _

</llo_original>
